<compile_context>
chip_gen: v7x
topology: tpu7x:2x2x1
jax: 0.10.0
libtpu: 0.0.40
codegen_flags: <defaults>
</compile_context>

<pallas_src>
import jax
import jax.numpy as jnp
from jax.experimental import pallas as pl
from jax.experimental.pallas import tpu as pltpu

IN_FEATURES = 784          # 1 * 28 * 28
HIDDEN = 128
OUT_FEATURES = 1
DEFAULT_BATCH_TILE = 2048  # multiple of 128; shrinks automatically for small batches
VMEM_LIMIT_BYTES = 32 * 1024 * 1024


def _round_up(x, m):
    return ((x + m - 1) // m) * m


def _discriminator_kernel(x_ref, w1_ref, b1_ref, w2_ref, b2_ref, o_ref):
    # x_ref : (TILE, 784) f32      w1_ref: (784, 128) bf16
    # b1_ref: (1, 128)   f32       w2_ref: (1, 128)   f32
    # b2_ref: (1, 1)     f32 SMEM  o_ref : (TILE, 1)  f32
    x_bf = x_ref[...].astype(jnp.bfloat16)                 # in-kernel cast, hides under DMA
    h = jnp.dot(x_bf, w1_ref[...], preferred_element_type=jnp.float32)
    h = h + b1_ref[...]
    h = jnp.where(h > 0, h, 0.2 * h)                       # LeakyReLU(0.2)
    # Second layer has N=1: do it as a VPU multiply + lane reduction instead of a 1-col matmul.
    z = jnp.sum(h * w2_ref[...], axis=-1, keepdims=True) + b2_ref[0, 0]
    o_ref[...] = jax.nn.sigmoid(z).astype(o_ref.dtype)


def prepare_params(w1, b1, w2, b2):
    """One-time cast/reshape of parameters into kernel-ready dtypes/layouts.

    Hoisted out of the per-call path so repeated forward passes (GAN training steps)
    don't re-emit tiny convert/reshape XLA ops every call.
    """
    w1_bf = w1.reshape(IN_FEATURES, HIDDEN).astype(jnp.bfloat16)
    b1_2d = b1.reshape(1, HIDDEN).astype(jnp.float32)
    w2_row = w2.reshape(1, HIDDEN).astype(jnp.float32)      # row vector for the VPU reduction
    b2_2d = b2.reshape(1, 1).astype(jnp.float32)
    return w1_bf, b1_2d, w2_row, b2_2d


def discriminator_forward(x, params, *, batch_tile=None):
    """x: (B, 1, 28, 28) or (B, 784) float32 -> (B, 1) float32 probabilities."""
    w1_bf, b1_2d, w2_row, b2_2d = params
    B = x.shape[0]
    x2d = x.reshape(B, -1).astype(jnp.float32)   # no bf16 materialization; cast happens in-kernel
    assert x2d.shape[1] == IN_FEATURES

    if batch_tile is None:
        batch_tile = min(DEFAULT_BATCH_TILE, _round_up(B, 8))
    assert batch_tile % 8 == 0

    grid = (pl.cdiv(B, batch_tile),)

    cost = pl.CostEstimate(
        flops=2 * B * IN_FEATURES * HIDDEN + 4 * B * HIDDEN,
        transcendentals=B,                                   # sigmoid exp per row
        bytes_accessed=(B * IN_FEATURES * 4                  # x (f32)
                        + IN_FEATURES * HIDDEN * 2           # W1 (bf16)
                        + 2 * HIDDEN * 4 + 4                 # b1, w2 row, b2
                        + B * OUT_FEATURES * 4),             # output
    )

    return pl.pallas_call(
        _discriminator_kernel,
        out_shape=jax.ShapeDtypeStruct((B, OUT_FEATURES), jnp.float32),
        grid_spec=pltpu.PrefetchScalarGridSpec(
            num_scalar_prefetch=0,
            grid=grid,
            in_specs=[
                pl.BlockSpec((batch_tile, IN_FEATURES), lambda i: (i, 0)),
                pl.BlockSpec((IN_FEATURES, HIDDEN), lambda i: (0, 0)),
                pl.BlockSpec((1, HIDDEN), lambda i: (0, 0)),
                pl.BlockSpec((1, HIDDEN), lambda i: (0, 0)),
                pl.BlockSpec(memory_space=pltpu.MemorySpace.SMEM),   # b2 scalar
            ],
            out_specs=pl.BlockSpec((batch_tile, OUT_FEATURES), lambda i: (i, 0)),
        ),
        compiler_params=pltpu.CompilerParams(
            dimension_semantics=("parallel",),   # batch tiles can shard across v7x's 2 TCs
            vmem_limit_bytes=VMEM_LIMIT_BYTES,   # large tile fits v5e's 16 MiB scoped default too
        ),
        cost_estimate=cost,
    )(x2d, w1_bf, b1_2d, w2_row, b2_2d)


def init_params(key):
    """Deterministic init matching nn.Linear's default (uniform +/- 1/sqrt(fan_in))."""
    k1, k2, k3, k4 = jax.random.split(key, 4)
    bound1 = 1.0 / (IN_FEATURES ** 0.5)
    bound2 = 1.0 / (HIDDEN ** 0.5)
    w1 = jax.random.uniform(k1, (IN_FEATURES, HIDDEN), jnp.float32, -bound1, bound1)
    b1 = jax.random.uniform(k2, (HIDDEN,), jnp.float32, -bound1, bound1)
    w2 = jax.random.uniform(k3, (HIDDEN, OUT_FEATURES), jnp.float32, -bound2, bound2)
    b2 = jax.random.uniform(k4, (OUT_FEATURES,), jnp.float32, -bound2, bound2)
    return w1, b1, w2, b2


def _reference(x, w1, b1, w2, b2):
    # Same numerics path as the kernel (bf16 operands to the first matmul, f32 accumulate).
    B = x.shape[0]
    x2d = x.reshape(B, -1)
    h = jnp.dot(x2d.astype(jnp.bfloat16), w1.astype(jnp.bfloat16),
                preferred_element_type=jnp.float32) + b1.reshape(1, HIDDEN)
    h = jnp.where(h > 0, h, 0.2 * h)
    z = jnp.dot(h, w2.reshape(HIDDEN, OUT_FEATURES),
                preferred_element_type=jnp.float32) + b2.reshape(1, OUT_FEATURES)
    return jax.nn.sigmoid(z)


if __name__ == "__main__":
    key = jax.random.PRNGKey(0)
    k_in, k_params = jax.random.split(key)
    w1, b1, w2, b2 = init_params(k_params)
    params = prepare_params(w1, b1, w2, b2)   # one-time cast/reshape, hoisted out of the call

    # Small MNIST-shaped NCHW batch, as the module's forward implies.
    B = 2
    x = jax.random.normal(k_in, (B, 1, 28, 28), jnp.float32)

    out = jax.block_until_ready(discriminator_forward(x, params))
    ref = _reference(x, w1, b1, w2, b2)
    assert out.shape == (B, OUT_FEATURES)
    assert jnp.allclose(out, ref, atol=2e-3, rtol=2e-3)

    # Extra check: multiple grid steps + ragged last tile (no host-side padding).
    B2 = 20
    x2 = jax.random.normal(k_in, (B2, 1, 28, 28), jnp.float32)
    out2 = jax.block_until_ready(discriminator_forward(x2, params, batch_tile=8))
    ref2 = _reference(x2, w1, b1, w2, b2)
    assert out2.shape == (B2, OUT_FEATURES)
    assert jnp.allclose(out2, ref2, atol=2e-3, rtol=2e-3)

    print("KERNEL_OK")
</pallas_src>

<mosaic_0001>
module attributes {stable_mosaic.version = 11 : i64} {
  func.func @_discriminator_kernel(%arg0: i32, %arg1: memref<8x784xf32, #tpu.memory_space<vmem>>, %arg2: memref<784x128xbf16, #tpu.memory_space<vmem>>, %arg3: memref<1x128xf32, #tpu.memory_space<vmem>>, %arg4: memref<1x128xf32, #tpu.memory_space<vmem>>, %arg5: memref<1x1xf32, #tpu.memory_space<smem>>, %arg6: memref<8x1xf32, #tpu.memory_space<vmem>>) attributes {dimension_semantics = [#tpu.dimension_semantics<parallel>], iteration_bounds = array<i64: 1>, scalar_prefetch = 0 : i64, scratch_operands = 0 : i64, tpu.core_type = #tpu.core_type<tc>, window_params = [{transform_indices = @transform_0, window_bounds = array<i64: 8, 784>}, {pipeline_mode = #tpu.pipeline_mode<synchronous>, transform_indices = @transform_1, window_bounds = array<i64: 784, 128>}, {pipeline_mode = #tpu.pipeline_mode<synchronous>, transform_indices = @transform_2, window_bounds = array<i64: 1, 128>}, {pipeline_mode = #tpu.pipeline_mode<synchronous>, transform_indices = @transform_3, window_bounds = array<i64: 1, 128>}, {transform_indices = @transform_4, window_bounds = array<i64: 1, 1>}, {transform_indices = @transform_5, window_bounds = array<i64: 8, 1>}]} {
    %c0 = arith.constant 0 : index
    %c0_0 = arith.constant 0 : index
    %0 = vector.load %arg1[%c0, %c0_0] : memref<8x784xf32, #tpu.memory_space<vmem>>, vector<8x784xf32>
    %1 = arith.truncf %0 : vector<8x784xf32> to vector<8x784xbf16>
    %c0_1 = arith.constant 0 : index
    %c0_2 = arith.constant 0 : index
    %2 = vector.load %arg2[%c0_1, %c0_2] : memref<784x128xbf16, #tpu.memory_space<vmem>>, vector<784x128xbf16>
    %cst = arith.constant dense<0.000000e+00> : vector<8x128xf32>
    %3 = tpu.matmul %1, %2, %cst {dimension_numbers = #tpu.dot_dimension_numbers<[1], [0], [0], [1], [0, 0, 1, 1], [], []>} : vector<8x784xbf16>, vector<784x128xbf16>, vector<8x128xf32> -> vector<8x128xf32>
    %c0_3 = arith.constant 0 : index
    %c0_4 = arith.constant 0 : index
    %4 = vector.load %arg3[%c0_3, %c0_4] : memref<1x128xf32, #tpu.memory_space<vmem>>, vector<1x128xf32>
    %5 = vector.broadcast %4 : vector<1x128xf32> to vector<8x128xf32>
    %6 = arith.addf %3, %5 : vector<8x128xf32>
    %cst_5 = arith.constant 0.000000e+00 : f32
    %7 = vector.broadcast %cst_5 : f32 to vector<8x128xf32>
    %8 = arith.cmpf ogt, %6, %7 : vector<8x128xf32>
    %cst_6 = arith.constant 2.000000e-01 : f32
    %9 = vector.broadcast %cst_6 : f32 to vector<8x128xf32>
    %10 = arith.mulf %9, %6 : vector<8x128xf32>
    %11 = arith.select %8, %6, %10 : vector<8x128xi1>, vector<8x128xf32>
    %c0_7 = arith.constant 0 : index
    %c0_8 = arith.constant 0 : index
    %12 = vector.load %arg4[%c0_7, %c0_8] : memref<1x128xf32, #tpu.memory_space<vmem>>, vector<1x128xf32>
    %13 = vector.broadcast %12 : vector<1x128xf32> to vector<8x128xf32>
    %14 = arith.mulf %11, %13 : vector<8x128xf32>
    %cst_9 = arith.constant dense<0.000000e+00> : vector<8xf32>
    %15 = vector.multi_reduction <add>, %14, %cst_9 [1] : vector<8x128xf32> to vector<8xf32>
    %16 = vector.shape_cast %15 : vector<8xf32> to vector<8x1xf32>
    %c0_10 = arith.constant 0 : index
    %c0_11 = arith.constant 0 : index
    %17 = memref.load %arg5[%c0_10, %c0_11] : memref<1x1xf32, #tpu.memory_space<smem>>
    %18 = vector.broadcast %17 : f32 to vector<8x1xf32>
    %19 = arith.addf %16, %18 : vector<8x1xf32>
    %20 = arith.negf %19 : vector<8x1xf32>
    %21 = math.exp %20 : vector<8x1xf32>
    %cst_12 = arith.constant 1.000000e+00 : f32
    %22 = vector.broadcast %cst_12 : f32 to vector<8x1xf32>
    %23 = arith.addf %22, %21 : vector<8x1xf32>
    %24 = arith.divf %22, %23 : vector<8x1xf32>
    %c0_13 = arith.constant 0 : index
    %c0_14 = arith.constant 0 : index
    %25 = vector.load %arg6[%c0_13, %c0_14] : memref<8x1xf32, #tpu.memory_space<vmem>>, vector<8x1xf32>
    tpu.vector_store %arg6[%c0_13, %c0_14], %24 {strides = array<i32>} : memref<8x1xf32, #tpu.memory_space<vmem>>, vector<8x1xf32>,
    return
  }
  func.func @transform_0(%arg0: i32) -> (i32, i32) {
    %c0_i32 = arith.constant 0 : i32
    %c0_i32_0 = arith.constant 0 : i32
    return %arg0, %c0_i32 : i32, i32
  }
  func.func @transform_1(%arg0: i32) -> (i32, i32) {
    %c0_i32 = arith.constant 0 : i32
    %c0_i32_0 = arith.constant 0 : i32
    %c0_i32_1 = arith.constant 0 : i32
    return %c0_i32, %c0_i32_0 : i32, i32
  }
  func.func @transform_2(%arg0: i32) -> (i32, i32) {
    %c0_i32 = arith.constant 0 : i32
    %c0_i32_0 = arith.constant 0 : i32
    %c0_i32_1 = arith.constant 0 : i32
    return %c0_i32, %c0_i32_0 : i32, i32
  }
  func.func @transform_3(%arg0: i32) -> (i32, i32) {
    %c0_i32 = arith.constant 0 : i32
    %c0_i32_0 = arith.constant 0 : i32
    %c0_i32_1 = arith.constant 0 : i32
    return %c0_i32, %c0_i32_0 : i32, i32
  }
  func.func @transform_4(%arg0: i32) -> (i32, i32) {
    %c0_i32 = arith.constant 0 : i32
    %c0_i32_0 = arith.constant 0 : i32
    %c0_i32_1 = arith.constant 0 : i32
    return %c0_i32, %c0_i32_0 : i32, i32
  }
  func.func @transform_5(%arg0: i32) -> (i32, i32) {
    %c0_i32 = arith.constant 0 : i32
    %c0_i32_0 = arith.constant 0 : i32
    return %arg0, %c0_i32 : i32, i32
  }
}

</mosaic_0001>

<llo_original>
// kernel: tpu_custom_call.1
$region0: #{tpu_custom_call.1}
  #allocation0 [shape = 'u32[]', space=smem, size = 0x4, offset = 0x4, fixed_abs, tag = 'smem constant byte address 0x4 - core index']
  #allocation1 [shape = 'u32[144,128]{1,0:T(1,128)}', space=vmem, size = 0x12000, scoped, tag = 'internal scratch']
  #allocation2 [shape = 'f32[1,1]{1,0:T(1,128)S(6)}', space=smem, size = 0x200, scoped, tag = 'scoped memory for tpu_custom_call.1']
  %s0 = inlined_call_operand.hbm [shape: f32[2,784], index: 0, kind: input, shape index: {}]
  %s1 = inlined_call_operand.hbm [shape: bf16[784,128], index: 1, kind: input, shape index: {}]
  %s2 = inlined_call_operand.vmem [shape: f32[1,128], index: 2, kind: input, shape index: {}]
  %s3 = inlined_call_operand.vmem [shape: f32[1,128], index: 3, kind: input, shape index: {}]
  %s4 = inlined_call_operand.<no memory space> [shape: f32[1,1], index: 4, kind: input, shape index: {}]
  %s5 = inlined_call_operand.vmem [shape: f32[2,1], index: 5, kind: output, shape index: {}]
  %s6 = sld [smem:[#allocation0]]
  $region68: #{tpu_custom_call.1} parent=0
    _
  %s8 = ssub.s32 1, %s6
  %s9 = scalar_select 0, %s8, %s6
  %10 = sst [smem:[#allocation2]] %s4
  $region1: #{tpu_custom_call.1} parent=0
    #allocation3 [shape = 'u8[28672]{0}', space=vmem, size = 0x7000, scoped, tag = 'input window, operand 0, single buffered']
    #allocation4 [shape = 's32[1]{0}', space=sflag, size = 0x4, scoped, tag = 'scoped memory for tpu_custom_call.1']
    #allocation5 [shape = 'u8[200704]{0}', space=vmem, size = 0x31000, scoped, tag = 'input window, operand 1, single buffered']
    #allocation6 [shape = 's32[1]{0}', space=sflag, size = 0x4, scoped, tag = 'scoped memory for tpu_custom_call.1']
    #allocation7 [shape = 'u8[4096]{0}', space=vmem, size = 0x1000, scoped, tag = 'output window, operand 0, single buffered']
    %11 = vsyncpa [#allocation4], 0
    %12 = vsyncpa [#allocation6], 0
    // Predicated region
    $region2: #{tpu_custom_call.1} parent=1 // pred_check
      _
    $region3: #{tpu_custom_call.1} parent=1 // pred_check_branch
      %14 = sbr.rel (0) target = $region5
    $region4: #{tpu_custom_call.1} parent=1 // pred_region
      %s16 = ssub.s32 896, 224
      %17 = vsyncadd [#allocation4], %s16
      %s18 = sshll.u32 [#allocation3], 4
      %s19 = int_to_ptr.vmem [resolvable:$true] %s18
      %24 = dma.hbm_to_vmem [thread:$0]  %s0, 224, %s19, [#allocation4], 224, 224, 14
    $region5: #{tpu_custom_call.1} parent=1 // pred_fallthru
      _
    // Predicated region
    $region6: #{tpu_custom_call.1} parent=1 // pred_check
      _
    $region7: #{tpu_custom_call.1} parent=1 // pred_check_branch
      %26 = sbr.rel (0) target = $region9
    $region8: #{tpu_custom_call.1} parent=1 // pred_region
      %s28 = ssub.s32 6272, 6272
      %29 = vsyncadd [#allocation6], %s28
      %s30 = sshll.u32 [#allocation5], 4
      %s31 = int_to_ptr.vmem [resolvable:$true] %s30
      %36 = dma.hbm_to_vmem [thread:$0]  %s1, 6272, %s31, [#allocation6], 64, 64, 4
    $region9: #{tpu_custom_call.1} parent=1 // pred_fallthru
      _
    // Predicated region
    $region10: #{tpu_custom_call.1} parent=1 // pred_check
      _
    $region11: #{tpu_custom_call.1} parent=1 // pred_check_branch
      %38 = sbr.rel (0) target = $region13
    $region12: #{tpu_custom_call.1} parent=1 // pred_region
      _
    $region13: #{tpu_custom_call.1} parent=1 // pred_fallthru
      _
    // Predicated region
    $region14: #{tpu_custom_call.1} parent=1 // pred_check
      _
    $region15: #{tpu_custom_call.1} parent=1 // pred_check_branch
      %40 = sbr.rel (0) target = $region17
    $region16: #{tpu_custom_call.1} parent=1 // pred_region
      _
    $region17: #{tpu_custom_call.1} parent=1 // pred_fallthru
      _
    // Predicated region
    $region18: #{tpu_custom_call.1} parent=1 // pred_check
      _
    $region19: #{tpu_custom_call.1} parent=1 // pred_check_branch
      %42 = sbr.rel (0) target = $region21
    $region20: #{tpu_custom_call.1} parent=1 // pred_region
      _
    $region21: #{tpu_custom_call.1} parent=1 // pred_fallthru
      _
    // Predicated region
    $region22: #{tpu_custom_call.1} parent=1 // pred_check
      _
    $region23: #{tpu_custom_call.1} parent=1 // pred_check_branch
      %44 = sbr.rel (0) target = $region25
    $region24: #{tpu_custom_call.1} parent=1 // pred_region
      %45 = dma.done [#allocation4], 896
    $region25: #{tpu_custom_call.1} parent=1 // pred_fallthru
      _
    // Predicated region
    $region26: #{tpu_custom_call.1} parent=1 // pred_check
      _
    $region27: #{tpu_custom_call.1} parent=1 // pred_check_branch
      %47 = sbr.rel (0) target = $region29
    $region28: #{tpu_custom_call.1} parent=1 // pred_region
      %48 = dma.done [#allocation6], 6272
    $region29: #{tpu_custom_call.1} parent=1 // pred_fallthru
      _
    %v50 = vld [vmem:[#allocation3] sm:$0xff]
    %v51 = vld [vmem:[#allocation3 + $0x8] sm:$0x3f]
    %v52 = vld [vmem:[#allocation3 + $0xe] sm:$0xff]
    %v53 = vld [vmem:[#allocation3 + $0x16] sm:$0x3f]
    %v54 = vld [vmem:[#allocation3 + $0x1c] sm:$0xff]
    %v55 = vld [vmem:[#allocation3 + $0x24] sm:$0x3f]
    %v56 = vld [vmem:[#allocation3 + $0x2a] sm:$0xff]
    %v57 = vld [vmem:[#allocation3 + $0x32] sm:$0x3f]
    %v66 = vcombine.low %v50, %v52
    %v67 = vcombine.high %v50, %v52
    %v68 = vcombine.low %v54, %v56
    %v69 = vcombine.high %v54, %v56
    %v71 = vunpack.c.l.s4 1983009808
    %v72 = vunpack.c.0.s8 %v71
    %v73 = vlaneseq
    %v74 = vshrl.u32 %v73, 7
    %v75 = vsub.s32 %v72, %v74
    %v76 = vrot.slane %v66, %v75
    %v78 = vunpack.c.l.s4 1983009808
    %v79 = vunpack.c.0.s8 %v78
    %v80 = vlaneseq
    %v81 = vshrl.u32 %v80, 7
    %v82 = vsub.s32 %v79, %v81
    %v83 = vrot.slane %v67, %v82
    %v85 = vunpack.c.l.s4 1983009808
    %v86 = vunpack.c.0.s8 %v85
    %v87 = vlaneseq
    %v88 = vshrl.u32 %v87, 7
    %v89 = vsub.s32 %v86, %v88
    %v90 = vrot.slane %v68, %v89
    %v92 = vunpack.c.l.s4 1983009808
    %v93 = vunpack.c.0.s8 %v92
    %v94 = vlaneseq
    %v95 = vshrl.u32 %v94, 7
    %v96 = vsub.s32 %v93, %v95
    %v97 = vrot.slane %v69, %v96
    %v98 = vcombine.low %v76, %v90
    %v99 = vcombine.high %v76, %v90
    %v100 = vcombine.low %v83, %v97
    %v101 = vcombine.high %v83, %v97
    %v102 = vcombine.low %v51, %v53
    %v103 = vcombine.high %v51, %v53
    %v104 = vcombine.low %v55, %v57
    %v105 = vcombine.high %v55, %v57
    %v107 = vunpack.c.l.s4 1983009808
    %v108 = vunpack.c.0.s8 %v107
    %v109 = vlaneseq
    %v110 = vshrl.u32 %v109, 7
    %v111 = vsub.s32 %v108, %v110
    %v112 = vrot.slane %v102, %v111
    %v114 = vunpack.c.l.s4 1983009808
    %v115 = vunpack.c.0.s8 %v114
    %v116 = vlaneseq
    %v117 = vshrl.u32 %v116, 7
    %v118 = vsub.s32 %v115, %v117
    %v119 = vrot.slane %v103, %v118
    %v121 = vunpack.c.l.s4 1983009808
    %v122 = vunpack.c.0.s8 %v121
    %v123 = vlaneseq
    %v124 = vshrl.u32 %v123, 7
    %v125 = vsub.s32 %v122, %v124
    %v126 = vrot.slane %v104, %v125
    %v128 = vunpack.c.l.s4 1983009808
    %v129 = vunpack.c.0.s8 %v128
    %v130 = vlaneseq
    %v131 = vshrl.u32 %v130, 7
    %v132 = vsub.s32 %v129, %v131
    %v133 = vrot.slane %v105, %v132
    %v134 = vcombine.low %v112, %v126
    %v135 = vcombine.high %v112, %v126
    %v136 = vcombine.low %v119, %v133
    %v144 = vpack.c.bf16 %v98, %v98
    %v145 = vpack.c.bf16 %v99, %v99
    %v146 = vpack.c.bf16 %v100, %v100
    %v147 = vpack.c.bf16 %v101, %v101
    %v148 = vpack.c.bf16 %v134, %v134
    %v149 = vpack.c.bf16 %v135, %v135
    %v150 = vpack.c.bf16 %v136, %v136
    %v151 = vld [vmem:[#allocation5] sm:$0xf]
    %v152 = vld [vmem:[#allocation5 + $0x4] sm:$0xf]
    %v153 = vld [vmem:[#allocation5 + $0x8] sm:$0xf]
    %v154 = vld [vmem:[#allocation5 + $0xc] sm:$0xf]
    %v155 = vld [vmem:[#allocation5 + $0x10] sm:$0xf]
    %v156 = vld [vmem:[#allocation5 + $0x14] sm:$0xf]
    %v157 = vld [vmem:[#allocation5 + $0x18] sm:$0xf]
    %v158 = vld [vmem:[#allocation5 + $0x1c] sm:$0xf]
    %v159 = vld [vmem:[#allocation5 + $0x20] sm:$0xf]
    %v160 = vld [vmem:[#allocation5 + $0x24] sm:$0xf]
    %v161 = vld [vmem:[#allocation5 + $0x28] sm:$0xf]
    %v162 = vld [vmem:[#allocation5 + $0x2c] sm:$0xf]
    %v163 = vld [vmem:[#allocation5 + $0x30] sm:$0xf]
    %v164 = vld [vmem:[#allocation5 + $0x34] sm:$0xf]
    %v165 = vld [vmem:[#allocation5 + $0x38] sm:$0xf]
    %v166 = vld [vmem:[#allocation5 + $0x3c] sm:$0xf]
    %v167 = vld [vmem:[#allocation5 + $0x40] sm:$0xf]
    %v168 = vld [vmem:[#allocation5 + $0x44] sm:$0xf]
    %v169 = vld [vmem:[#allocation5 + $0x48] sm:$0xf]
    %v170 = vld [vmem:[#allocation5 + $0x4c] sm:$0xf]
    %v171 = vld [vmem:[#allocation5 + $0x50] sm:$0xf]
    %v172 = vld [vmem:[#allocation5 + $0x54] sm:$0xf]
    %v173 = vld [vmem:[#allocation5 + $0x58] sm:$0xf]
    %v174 = vld [vmem:[#allocation5 + $0x5c] sm:$0xf]
    %v175 = vld [vmem:[#allocation5 + $0x60] sm:$0xf]
    %v176 = vld [vmem:[#allocation5 + $0x64] sm:$0xf]
    %v177 = vld [vmem:[#allocation5 + $0x68] sm:$0xf]
    %v178 = vld [vmem:[#allocation5 + $0x6c] sm:$0xf]
    %v179 = vld [vmem:[#allocation5 + $0x70] sm:$0xf]
    %v180 = vld [vmem:[#allocation5 + $0x74] sm:$0xf]
    %v181 = vld [vmem:[#allocation5 + $0x78] sm:$0xf]
    %v182 = vld [vmem:[#allocation5 + $0x7c] sm:$0xf]
    %v183 = vld [vmem:[#allocation5 + $0x80] sm:$0xf]
    %v184 = vld [vmem:[#allocation5 + $0x84] sm:$0xf]
    %v185 = vld [vmem:[#allocation5 + $0x88] sm:$0xf]
    %v186 = vld [vmem:[#allocation5 + $0x8c] sm:$0xf]
    %v187 = vld [vmem:[#allocation5 + $0x90] sm:$0xf]
    %v188 = vld [vmem:[#allocation5 + $0x94] sm:$0xf]
    %v189 = vld [vmem:[#allocation5 + $0x98] sm:$0xf]
    %v190 = vld [vmem:[#allocation5 + $0x9c] sm:$0xf]
    %v191 = vld [vmem:[#allocation5 + $0xa0] sm:$0xf]
    %v192 = vld [vmem:[#allocation5 + $0xa4] sm:$0xf]
    %v193 = vld [vmem:[#allocation5 + $0xa8] sm:$0xf]
    %v194 = vld [vmem:[#allocation5 + $0xac] sm:$0xf]
    %v195 = vld [vmem:[#allocation5 + $0xb0] sm:$0xf]
    %v196 = vld [vmem:[#allocation5 + $0xb4] sm:$0xf]
    %v197 = vld [vmem:[#allocation5 + $0xb8] sm:$0xf]
    %v198 = vld [vmem:[#allocation5 + $0xbc] sm:$0xf]
    %v199 = vld [vmem:[#allocation5 + $0xc0] sm:$0xf]
    %v200 = vld [vmem:[#allocation5 + $0xc4] sm:$0xf]
    %v201 = vld [vmem:[#allocation5 + $0xc8] sm:$0xf]
    %v202 = vld [vmem:[#allocation5 + $0xcc] sm:$0xf]
    %v203 = vld [vmem:[#allocation5 + $0xd0] sm:$0xf]
    %v204 = vld [vmem:[#allocation5 + $0xd4] sm:$0xf]
    %v205 = vld [vmem:[#allocation5 + $0xd8] sm:$0xf]
    %v206 = vld [vmem:[#allocation5 + $0xdc] sm:$0xf]
    %v207 = vld [vmem:[#allocation5 + $0xe0] sm:$0xf]
    %v208 = vld [vmem:[#allocation5 + $0xe4] sm:$0xf]
    %v209 = vld [vmem:[#allocation5 + $0xe8] sm:$0xf]
    %v210 = vld [vmem:[#allocation5 + $0xec] sm:$0xf]
    %v211 = vld [vmem:[#allocation5 + $0xf0] sm:$0xf]
    %v212 = vld [vmem:[#allocation5 + $0xf4] sm:$0xf]
    %v213 = vld [vmem:[#allocation5 + $0xf8] sm:$0xf]
    %v214 = vld [vmem:[#allocation5 + $0xfc] sm:$0xf]
    %v215 = vld [vmem:[#allocation5 + $0x100] sm:$0xf]
    %v216 = vld [vmem:[#allocation5 + $0x104] sm:$0xf]
    %v217 = vld [vmem:[#allocation5 + $0x108] sm:$0xf]
    %v218 = vld [vmem:[#allocation5 + $0x10c] sm:$0xf]
    %v219 = vld [vmem:[#allocation5 + $0x110] sm:$0xf]
    %v220 = vld [vmem:[#allocation5 + $0x114] sm:$0xf]
    %v221 = vld [vmem:[#allocation5 + $0x118] sm:$0xf]
    %v222 = vld [vmem:[#allocation5 + $0x11c] sm:$0xf]
    %v223 = vld [vmem:[#allocation5 + $0x120] sm:$0xf]
    %v224 = vld [vmem:[#allocation5 + $0x124] sm:$0xf]
    %v225 = vld [vmem:[#allocation5 + $0x128] sm:$0xf]
    %v226 = vld [vmem:[#allocation5 + $0x12c] sm:$0xf]
    %v227 = vld [vmem:[#allocation5 + $0x130] sm:$0xf]
    %v228 = vld [vmem:[#allocation5 + $0x134] sm:$0xf]
    %v229 = vld [vmem:[#allocation5 + $0x138] sm:$0xf]
    %v230 = vld [vmem:[#allocation5 + $0x13c] sm:$0xf]
    %v231 = vld [vmem:[#allocation5 + $0x140] sm:$0xf]
    %v232 = vld [vmem:[#allocation5 + $0x144] sm:$0xf]
    %v233 = vld [vmem:[#allocation5 + $0x148] sm:$0xf]
    %v234 = vld [vmem:[#allocation5 + $0x14c] sm:$0xf]
    %v235 = vld [vmem:[#allocation5 + $0x150] sm:$0xf]
    %v236 = vld [vmem:[#allocation5 + $0x154] sm:$0xf]
    %v237 = vld [vmem:[#allocation5 + $0x158] sm:$0xf]
    %v238 = vld [vmem:[#allocation5 + $0x15c] sm:$0xf]
    %v239 = vld [vmem:[#allocation5 + $0x160] sm:$0xf]
    %v240 = vld [vmem:[#allocation5 + $0x164] sm:$0xf]
    %v241 = vld [vmem:[#allocation5 + $0x168] sm:$0xf]
    %v242 = vld [vmem:[#allocation5 + $0x16c] sm:$0xf]
    %v243 = vld [vmem:[#allocation5 + $0x170] sm:$0xf]
    %v244 = vld [vmem:[#allocation5 + $0x174] sm:$0xf]
    %v245 = vld [vmem:[#allocation5 + $0x178] sm:$0xf]
    %v246 = vld [vmem:[#allocation5 + $0x17c] sm:$0xf]
    %v247 = vld [vmem:[#allocation5 + $0x180] sm:$0xf]
    %v248 = vld [vmem:[#allocation5 + $0x184] sm:$0xf]
    %v249 = vld [vmem:[%s2] sm:$0x1]
    %v251 = vlaneseq
    %v252 = vshrl.u32 %v251, 7
    %v253 = vsub.s32 0, %v252
    %v254 = vrot.slane %v249, %v253
    %v354 = vunpack.c.l.b16 %v151
    %v355 = vunpack.c.l.b16 %v152
    %v356 = vunpack.c.l.b16 %v153
    %v357 = vunpack.c.l.b16 %v154
    %v358 = vunpack.c.l.b16 %v155
    %v359 = vunpack.c.l.b16 %v156
    %v360 = vunpack.c.l.b16 %v157
    %v361 = vunpack.c.l.b16 %v158
    %v362 = vunpack.c.l.b16 %v159
    %v363 = vunpack.c.l.b16 %v160
    %v364 = vunpack.c.l.b16 %v161
    %v365 = vunpack.c.l.b16 %v162
    %v366 = vunpack.c.l.b16 %v163
    %v367 = vunpack.c.l.b16 %v164
    %v368 = vunpack.c.l.b16 %v165
    %v369 = vunpack.c.l.b16 %v166
    %v370 = vunpack.c.l.b16 %v167
    %v371 = vunpack.c.l.b16 %v168
    %v372 = vunpack.c.l.b16 %v169
    %v373 = vunpack.c.l.b16 %v170
    %v374 = vunpack.c.l.b16 %v171
    %v375 = vunpack.c.l.b16 %v172
    %v376 = vunpack.c.l.b16 %v173
    %v377 = vunpack.c.l.b16 %v174
    %v378 = vunpack.c.l.b16 %v175
    %v379 = vunpack.c.l.b16 %v176
    %v380 = vunpack.c.l.b16 %v177
    %v381 = vunpack.c.l.b16 %v178
    %v382 = vunpack.c.l.b16 %v179
    %v383 = vunpack.c.l.b16 %v180
    %v384 = vunpack.c.l.b16 %v181
    %v385 = vunpack.c.l.b16 %v182
    %v386 = vunpack.c.l.b16 %v183
    %v387 = vunpack.c.l.b16 %v184
    %v388 = vunpack.c.l.b16 %v185
    %v389 = vunpack.c.l.b16 %v186
    %v390 = vunpack.c.l.b16 %v187
    %v391 = vunpack.c.l.b16 %v188
    %v392 = vunpack.c.l.b16 %v189
    %v393 = vunpack.c.l.b16 %v190
    %v394 = vunpack.c.l.b16 %v191
    %v395 = vunpack.c.l.b16 %v192
    %v396 = vunpack.c.l.b16 %v193
    %v397 = vunpack.c.l.b16 %v194
    %v398 = vunpack.c.l.b16 %v195
    %v399 = vunpack.c.l.b16 %v196
    %v400 = vunpack.c.l.b16 %v197
    %v401 = vunpack.c.l.b16 %v198
    %v402 = vunpack.c.l.b16 %v199
    %v403 = vunpack.c.l.b16 %v200
    %v404 = vunpack.c.l.b16 %v201
    %v405 = vunpack.c.l.b16 %v202
    %v406 = vunpack.c.l.b16 %v203
    %v407 = vunpack.c.l.b16 %v204
    %v408 = vunpack.c.l.b16 %v205
    %v409 = vunpack.c.l.b16 %v206
    %v410 = vunpack.c.l.b16 %v207
    %v411 = vunpack.c.l.b16 %v208
    %v412 = vunpack.c.l.b16 %v209
    %v413 = vunpack.c.l.b16 %v210
    %v414 = vunpack.c.l.b16 %v211
    %v415 = vunpack.c.l.b16 %v212
    %v416 = vunpack.c.l.b16 %v213
    %v417 = vunpack.c.l.b16 %v214
    %v418 = vunpack.c.l.b16 %v215
    %v419 = vunpack.c.l.b16 %v216
    %v420 = vunpack.c.l.b16 %v217
    %v421 = vunpack.c.l.b16 %v218
    %v422 = vunpack.c.l.b16 %v219
    %v423 = vunpack.c.l.b16 %v220
    %v424 = vunpack.c.l.b16 %v221
    %v425 = vunpack.c.l.b16 %v222
    %v426 = vunpack.c.l.b16 %v223
    %v427 = vunpack.c.l.b16 %v224
    %v428 = vunpack.c.l.b16 %v225
    %v429 = vunpack.c.l.b16 %v226
    %v430 = vunpack.c.l.b16 %v227
    %v431 = vunpack.c.l.b16 %v228
    %v432 = vunpack.c.l.b16 %v229
    %v433 = vunpack.c.l.b16 %v230
    %v434 = vunpack.c.l.b16 %v231
    %v435 = vunpack.c.l.b16 %v232
    %v436 = vunpack.c.l.b16 %v233
    %v437 = vunpack.c.l.b16 %v234
    %v438 = vunpack.c.l.b16 %v235
    %v439 = vunpack.c.l.b16 %v236
    %v440 = vunpack.c.l.b16 %v237
    %v441 = vunpack.c.l.b16 %v238
    %v442 = vunpack.c.l.b16 %v239
    %v443 = vunpack.c.l.b16 %v240
    %v444 = vunpack.c.l.b16 %v241
    %v445 = vunpack.c.l.b16 %v242
    %v446 = vunpack.c.l.b16 %v243
    %v447 = vunpack.c.l.b16 %v244
    %v448 = vunpack.c.l.b16 %v245
    %v449 = vunpack.c.l.b16 %v246
    %v450 = vunpack.c.l.b16 %v247
    %v451 = vunpack.c.l.b16 %v248
    %v452 = vpack.c.b16 %v355, %v354
    %v453 = vpack.c.b16 %v357, %v356
    %v454 = vpack.c.b16 %v359, %v358
    %v455 = vpack.c.b16 %v361, %v360
    %v456 = vpack.c.b16 %v363, %v362
    %v457 = vpack.c.b16 %v365, %v364
    %v458 = vpack.c.b16 %v367, %v366
    %v459 = vpack.c.b16 %v369, %v368
    %v460 = vpack.c.b16 %v371, %v370
    %v461 = vpack.c.b16 %v373, %v372
    %v462 = vpack.c.b16 %v375, %v374
    %v463 = vpack.c.b16 %v377, %v376
    %v464 = vpack.c.b16 %v379, %v378
    %v465 = vpack.c.b16 %v381, %v380
    %v466 = vpack.c.b16 %v383, %v382
    %v467 = vpack.c.b16 %v385, %v384
    %v468 = vpack.c.b16 %v387, %v386
    %v469 = vpack.c.b16 %v389, %v388
    %v470 = vpack.c.b16 %v391, %v390
    %v471 = vpack.c.b16 %v393, %v392
    %v472 = vpack.c.b16 %v395, %v394
    %v473 = vpack.c.b16 %v397, %v396
    %v474 = vpack.c.b16 %v399, %v398
    %v475 = vpack.c.b16 %v401, %v400
    %v476 = vpack.c.b16 %v403, %v402
    %v477 = vpack.c.b16 %v405, %v404
    %v478 = vpack.c.b16 %v407, %v406
    %v479 = vpack.c.b16 %v409, %v408
    %v480 = vpack.c.b16 %v411, %v410
    %v481 = vpack.c.b16 %v413, %v412
    %v482 = vpack.c.b16 %v415, %v414
    %v483 = vpack.c.b16 %v417, %v416
    %v484 = vpack.c.b16 %v419, %v418
    %v485 = vpack.c.b16 %v421, %v420
    %v486 = vpack.c.b16 %v423, %v422
    %v487 = vpack.c.b16 %v425, %v424
    %v488 = vpack.c.b16 %v427, %v426
    %v489 = vpack.c.b16 %v429, %v428
    %v490 = vpack.c.b16 %v431, %v430
    %v491 = vpack.c.b16 %v433, %v432
    %v492 = vpack.c.b16 %v435, %v434
    %v493 = vpack.c.b16 %v437, %v436
    %v494 = vpack.c.b16 %v439, %v438
    %v495 = vpack.c.b16 %v441, %v440
    %v496 = vpack.c.b16 %v443, %v442
    %v497 = vpack.c.b16 %v445, %v444
    %v498 = vpack.c.b16 %v447, %v446
    %v499 = vpack.c.b16 %v449, %v448
    %v500 = vpack.c.b16 %v451, %v450
    %vm550 = vcmask 130048
    %v552 = vsel %vm550, %v150, 0
    %554 = vmatprep.subr.bf16.mxu0 0
    %555 = vmatpush1.bf16.msra.mxu0 %v452
    %556 = vmatprep.subr.bf16.mxu0 0
    %557 = vmatpush1.bf16.msra.mxu0 %v453
    %558 = vmatprep.subr.bf16.mxu0 0
    %559 = vmatpush1.bf16.msra.mxu0 %v454
    %560 = vmatprep.subr.bf16.mxu0 0
    %561 = vmatpush1.bf16.msra.mxu0 %v455
    %562 = vmatprep.subr.bf16.mxu0 0
    %563 = vmatpush1.bf16.msra.mxu0 %v456
    %564 = vmatprep.subr.bf16.mxu0 0
    %565 = vmatpush1.bf16.msra.mxu0 %v457
    %566 = vmatprep.subr.bf16.mxu0 0
    %567 = vmatpush1.bf16.msra.mxu0 %v458
    %568 = vmatprep.subr.bf16.mxu0 0
    %569 = vmatpush1.bf16.msra.mxu0 %v459
    %570 = vmatprep.subr.bf16.mxu0 0
    %571 = vmatpush1.bf16.msra.mxu0 %v460
    %572 = vmatprep.subr.bf16.mxu0 0
    %573 = vmatpush1.bf16.msra.mxu0 %v461
    %574 = vmatprep.subr.bf16.mxu0 0
    %575 = vmatpush1.bf16.msra.mxu0 %v462
    %576 = vmatprep.subr.bf16.mxu0 0
    %577 = vmatpush1.bf16.msra.mxu0 %v463
    %578 = vmatprep.subr.bf16.mxu0 0
    %579 = vmatpush1.bf16.msra.mxu0 %v464
    %580 = vmatprep.subr.bf16.mxu0 0
    %581 = vmatpush1.bf16.msra.mxu0 %v465
    %582 = vmatprep.subr.bf16.mxu0 0
    %583 = vmatpush1.bf16.msra.mxu0 %v466
    %584 = vmatprep.subr.bf16.mxu0 0
    %585 = vmatpush1.bf16.msra.mxu0 %v467
    %586 = vmatprep.mubr.bf16.mxu0 %v145
    %587 = vmatmul.mubr.bf16.gmra.mrb[0].mxu0 %v144
    %v588 = vpop.f32.mrb[0].mxu0
    %v589 = vadd.f32 %v254, %v588
    %v590 = vpop.f32.mrb[0].mxu0
    %v591 = vpop.f32.mrb[0].mxu0
    %v592 = vpop.f32.mrb[0].mxu0
    %593 = vdwg.mxu0
    %594 = vmatprep.subr.bf16.mxu0 0
    %595 = vmatpush1.bf16.msra.mxu0 %v468
    %596 = vmatprep.subr.bf16.mxu0 0
    %597 = vmatpush1.bf16.msra.mxu0 %v469
    %598 = vmatprep.subr.bf16.mxu0 0
    %599 = vmatpush1.bf16.msra.mxu0 %v470
    %600 = vmatprep.subr.bf16.mxu0 0
    %601 = vmatpush1.bf16.msra.mxu0 %v471
    %602 = vmatprep.subr.bf16.mxu0 0
    %603 = vmatpush1.bf16.msra.mxu0 %v472
    %604 = vmatprep.subr.bf16.mxu0 0
    %605 = vmatpush1.bf16.msra.mxu0 %v473
    %606 = vmatprep.subr.bf16.mxu0 0
    %607 = vmatpush1.bf16.msra.mxu0 %v474
    %608 = vmatprep.subr.bf16.mxu0 0
    %609 = vmatpush1.bf16.msra.mxu0 %v475
    %610 = vmatprep.subr.bf16.mxu0 0
    %611 = vmatpush1.bf16.msra.mxu0 %v476
    %612 = vmatprep.subr.bf16.mxu0 0
    %613 = vmatpush1.bf16.msra.mxu0 %v477
    %614 = vmatprep.subr.bf16.mxu0 0
    %615 = vmatpush1.bf16.msra.mxu0 %v478
    %616 = vmatprep.subr.bf16.mxu0 0
    %617 = vmatpush1.bf16.msra.mxu0 %v479
    %618 = vmatprep.subr.bf16.mxu0 0
    %619 = vmatpush1.bf16.msra.mxu0 %v480
    %620 = vmatprep.subr.bf16.mxu0 0
    %621 = vmatpush1.bf16.msra.mxu0 %v481
    %622 = vmatprep.subr.bf16.mxu0 0
    %623 = vmatpush1.bf16.msra.mxu0 %v482
    %624 = vmatprep.subr.bf16.mxu0 0
    %625 = vmatpush1.bf16.msra.mxu0 %v483
    %626 = vmatprep.mubr.bf16.mxu0 %v147
    %627 = vmatmul.mubr.bf16.gmra.mrb[0].mxu0 %v146
    %v628 = vpop.f32.mrb[0].mxu0
    %v629 = vadd.f32 %v589, %v628
    %v630 = vpop.f32.mrb[0].mxu0
    %v631 = vpop.f32.mrb[0].mxu0
    %v632 = vpop.f32.mrb[0].mxu0
    %633 = vdwg.mxu0
    %634 = vmatprep.subr.bf16.mxu0 0
    %635 = vmatpush1.bf16.msra.mxu0 %v484
    %636 = vmatprep.subr.bf16.mxu0 0
    %637 = vmatpush1.bf16.msra.mxu0 %v485
    %638 = vmatprep.subr.bf16.mxu0 0
    %639 = vmatpush1.bf16.msra.mxu0 %v486
    %640 = vmatprep.subr.bf16.mxu0 0
    %641 = vmatpush1.bf16.msra.mxu0 %v487
    %642 = vmatprep.subr.bf16.mxu0 0
    %643 = vmatpush1.bf16.msra.mxu0 %v488
    %644 = vmatprep.subr.bf16.mxu0 0
    %645 = vmatpush1.bf16.msra.mxu0 %v489
    %646 = vmatprep.subr.bf16.mxu0 0
    %647 = vmatpush1.bf16.msra.mxu0 %v490
    %648 = vmatprep.subr.bf16.mxu0 0
    %649 = vmatpush1.bf16.msra.mxu0 %v491
    %650 = vmatprep.subr.bf16.mxu0 0
    %651 = vmatpush1.bf16.msra.mxu0 %v492
    %652 = vmatprep.subr.bf16.mxu0 0
    %653 = vmatpush1.bf16.msra.mxu0 %v493
    %654 = vmatprep.subr.bf16.mxu0 0
    %655 = vmatpush1.bf16.msra.mxu0 %v494
    %656 = vmatprep.subr.bf16.mxu0 0
    %657 = vmatpush1.bf16.msra.mxu0 %v495
    %658 = vmatprep.subr.bf16.mxu0 0
    %659 = vmatpush1.bf16.msra.mxu0 %v496
    %660 = vmatprep.subr.bf16.mxu0 0
    %661 = vmatpush1.bf16.msra.mxu0 %v497
    %662 = vmatprep.subr.bf16.mxu0 0
    %663 = vmatpush1.bf16.msra.mxu0 %v498
    %664 = vmatprep.subr.bf16.mxu0 0
    %665 = vmatpush1.bf16.msra.mxu0 %v499
    %666 = vmatprep.mubr.bf16.mxu0 %v149
    %667 = vmatmul.mubr.bf16.gmra.mrb[0].mxu0 %v148
    %v668 = vpop.f32.mrb[0].mxu0
    %v669 = vadd.f32 %v629, %v668
    %v670 = vpop.f32.mrb[0].mxu0
    %v671 = vpop.f32.mrb[0].mxu0
    %v672 = vpop.f32.mrb[0].mxu0
    %673 = vdwg.mxu0
    %674 = vmatprep.subr.bf16.mxu0 0
    %675 = vmatpush1.bf16.msra.mxu0 %v500
    %676 = vmatprep.subr.bf16.mxu0 0
    %677 = vmatpush1.bf16.msra.mxu0 0
    %678 = vmatprep.subr.bf16.mxu0 0
    %679 = vmatpush1.bf16.msra.mxu0 0
    %680 = vmatprep.subr.bf16.mxu0 0
    %681 = vmatpush1.bf16.msra.mxu0 0
    %682 = vmatprep.subr.bf16.mxu0 0
    %683 = vmatpush1.bf16.msra.mxu0 0
    %684 = vmatprep.subr.bf16.mxu0 0
    %685 = vmatpush1.bf16.msra.mxu0 0
    %686 = vmatprep.subr.bf16.mxu0 0
    %687 = vmatpush1.bf16.msra.mxu0 0
    %688 = vmatprep.subr.bf16.mxu0 0
    %689 = vmatpush1.bf16.msra.mxu0 0
    %690 = vmatprep.subr.bf16.mxu0 0
    %691 = vmatpush1.bf16.msra.mxu0 0
    %692 = vmatprep.subr.bf16.mxu0 0
    %693 = vmatpush1.bf16.msra.mxu0 0
    %694 = vmatprep.subr.bf16.mxu0 0
    %695 = vmatpush1.bf16.msra.mxu0 0
    %696 = vmatprep.subr.bf16.mxu0 0
    %697 = vmatpush1.bf16.msra.mxu0 0
    %698 = vmatprep.subr.bf16.mxu0 0
    %699 = vmatpush1.bf16.msra.mxu0 0
    %700 = vmatprep.subr.bf16.mxu0 0
    %701 = vmatpush1.bf16.msra.mxu0 0
    %702 = vmatprep.subr.bf16.mxu0 0
    %703 = vmatpush1.bf16.msra.mxu0 0
    %704 = vmatprep.subr.bf16.mxu0 0
    %705 = vmatpush1.bf16.msra.mxu0 0
    %706 = vmatprep.mubr.bf16.mxu0 0
    %707 = vmatmul.mubr.bf16.gmra.mrb[0].mxu0 %v552
    %v708 = vpop.f32.mrb[0].mxu0
    %v709 = vadd.f32 %v669, %v708
    %v710 = vpop.f32.mrb[0].mxu0
    %v711 = vpop.f32.mrb[0].mxu0
    %v712 = vpop.f32.mrb[0].mxu0
    %713 = vdwg.mxu0
    %vm714 = vcmp.gt.f32.partialorder %v709, 0.0
    %v715 = vmul.f32 %v709, 0.2
    %v716 = vsel %vm714, %v709, %v715
    %v717 = vld [vmem:[%s3] sm:$0x1]
    %v719 = vlaneseq
    %v720 = vshrl.u32 %v719, 7
    %v721 = vsub.s32 0, %v720
    %v722 = vrot.slane %v717, %v721
    %v724 = vmul.f32 %v716, %v722
    %725 = vadd.xlane.f32.xlu0 %v724
    %v726 = vpop.xlane.xlu0 %725
    %s727 = sld [smem:[#allocation2]]
    %v728 = vstv %s727
    %v729 = vadd.f32 %v726, %v728
    %v730 = vxor.u32 %v729, 2147483648
    %v731 = vmul.f32 %v730, 1.442695
    %v732 = vpow.pop %v731
    %v733 = vadd.f32 %v732, 1.0
    %v734 = vrcp.pop %v733
    %v735 = vmul.f32 1.0, %v734
    %vm736 = vcmask 7168
    %737 = vst.msk [vmem:[#allocation7] sm:$0xff] %vm736, %v735
    // Predicated region
    $region30: #{tpu_custom_call.1} parent=1 // pred_check
      _
    $region31: #{tpu_custom_call.1} parent=1 // pred_check_branch
      %739 = sbr.rel (0) target = $region33
    $region32: #{tpu_custom_call.1} parent=1 // pred_region
      // Predicated region
      $region34: #{tpu_custom_call.1} parent=32 // pred_check
        _
      $region35: #{tpu_custom_call.1} parent=32 // pred_check_branch
        %741 = sbr.rel (0) target = $region37
      $region36: #{tpu_custom_call.1} parent=32 // pred_region
        // Predicated region
        $region38: #{tpu_custom_call.1} parent=36 // pred_check
          _
        $region39: #{tpu_custom_call.1} parent=36 // pred_check_branch
          %743 = sbr.rel target = $region41
        $region40: #{tpu_custom_call.1} parent=36 // pred_region
          // Predicated region
          $region53: #{tpu_custom_call.1} parent=40 // pred_check
            _
          $region54: #{tpu_custom_call.1} parent=40 // pred_check_branch
            %758 = sbr.rel (0) target = $region56
          $region55: #{tpu_custom_call.1} parent=40 // pred_region
            loop: start=0, step=1, limit=1
            $region57: #{tpu_custom_call.1} parent=55 // loop_pre_header
              _
            $region58: #{tpu_custom_call.1} parent=55 // loop_header
              %s761 = sphi 0, %s765
              %p762 = scmp.ge.s32.totalorder %s761, 1
              %s766 = sphi [#allocation7], [#allocation7]
              %s767 = sphi %s5, %s5
            $region59: #{tpu_custom_call.1} parent=55 // loop_header_branch
              %764 = sbr.rel (%p762) target = $region63
            $region60: #{tpu_custom_call.1} parent=55 // loop_body
              %v768 = vld [vmem:[%s766] sm:$0x3]
              %769 = vst [vmem:[%s767] sm:$0x3] %v768
            $region61: #{tpu_custom_call.1} parent=55 // loop_footer
              %s765 = sadd.s32 1, %s761
            $region62: #{tpu_custom_call.1} parent=55 // loop_footer_branch
              %760 = sbr.rel target = $region58
            $region63: #{tpu_custom_call.1} parent=55 // loop_exit
              _
          $region56: #{tpu_custom_call.1} parent=40 // pred_fallthru
            _
        $region41: #{tpu_custom_call.1} parent=36 // pred_fallthru
          _
        // Predicated region
        $region42: #{tpu_custom_call.1} parent=36 // pred_check
          _
        $region43: #{tpu_custom_call.1} parent=36 // pred_check_branch
          %745 = sbr.rel (0) target = $region45
        $region44: #{tpu_custom_call.1} parent=36 // pred_region
          loop: start=0, step=1, limit=1
          $region46: #{tpu_custom_call.1} parent=44 // loop_pre_header
            _
          $region47: #{tpu_custom_call.1} parent=44 // loop_header
            %s748 = sphi 0, %s752
            %p749 = scmp.ge.s32.totalorder %s748, 1
            %s753 = sphi [#allocation7], [#allocation7]
            %s754 = sphi %s5, %s5
          $region48: #{tpu_custom_call.1} parent=44 // loop_header_branch
            %751 = sbr.rel (%p749) target = $region52
          $region49: #{tpu_custom_call.1} parent=44 // loop_body
            %v755 = vld [vmem:[%s753] sm:$0x3]
            %756 = vst [vmem:[%s754] sm:$0x3] %v755
          $region50: #{tpu_custom_call.1} parent=44 // loop_footer
            %s752 = sadd.s32 1, %s748
          $region51: #{tpu_custom_call.1} parent=44 // loop_footer_branch
            %747 = sbr.rel target = $region47
          $region52: #{tpu_custom_call.1} parent=44 // loop_exit
            _
        $region45: #{tpu_custom_call.1} parent=36 // pred_fallthru
          _
      $region37: #{tpu_custom_call.1} parent=32 // pred_fallthru
        _
      %770 = vnop
    $region33: #{tpu_custom_call.1} parent=1 // pred_fallthru
      _
    // Predicated region
    $region64: #{tpu_custom_call.1} parent=1 // pred_check
      _
    $region65: #{tpu_custom_call.1} parent=1 // pred_check_branch
      %772 = sbr.rel (0) target = $region67
    $region66: #{tpu_custom_call.1} parent=1 // pred_region
      _
    $region67: #{tpu_custom_call.1} parent=1 // pred_fallthru
      _
    %773 = vsyncpa [#allocation4], 1
    %774 = vsyncpa [#allocation6], 1

</llo_original>
